<compile_context>
chip_gen: v5e
topology: v5e:2x2
jax: 0.10.0
libtpu: 0.0.40
codegen_flags: <defaults>
</compile_context>

<pallas_src>
import functools

import jax
import jax.numpy as jnp
from jax.experimental import pallas as pl
from jax.experimental.pallas import tpu as pltpu


def _awl_kernel(losses_ref, params_ref, out_ref):
    # losses_ref: (1, num) f32 in VMEM
    # params_ref: (1, num) f32 in VMEM
    # out_ref:    (1, 1)   f32 in SMEM
    losses = losses_ref[...]
    p = params_ref[...]
    p2 = p * p

    # Exact math: 0.5 / p^2 * loss + log(1 + p^2)
    term = 0.5 * losses / p2 + jnp.log1p(p2)

    out_ref[0, 0] = jnp.sum(term)


@jax.jit
def automatic_weighted_loss(losses, params):
    """losses: (num,) array of task losses; params: (num,) learnable weights."""
    num = losses.shape[0]

    losses_2d = losses.astype(jnp.float32).reshape(1, num)
    params_2d = params.astype(jnp.float32).reshape(1, num)

    out = pl.pallas_call(
        _awl_kernel,
        out_shape=jax.ShapeDtypeStruct((1, 1), jnp.float32),
        in_specs=[
            pl.BlockSpec(memory_space=pltpu.VMEM),
            pl.BlockSpec(memory_space=pltpu.VMEM),
        ],
        out_specs=pl.BlockSpec(memory_space=pltpu.SMEM),
        compiler_params=pltpu.CompilerParams(
            # Allow XLA to fuse the reshape/astype producers into the custom call.
            allow_input_fusion=[True, True],
        ),
        # Negligible work: let XLA schedule/overlap this call freely.
        cost_estimate=pl.CostEstimate(
            flops=8 * num,
            transcendentals=num,
            bytes_accessed=8 * num + 4,
        ),
    )(losses_2d, params_2d)

    # TODO(synk): forward pass only — no custom VJP is defined for the pallas_call,
    # so gradients w.r.t. params/losses would need an explicit VJP for training use.
    return out[0, 0]


if __name__ == "__main__":
    num = 2  # AutomaticWeightedLoss(num=2)

    # Deterministic parameter init, matching nn.Parameter(torch.ones(num))
    params = jnp.ones((num,), dtype=jnp.float32)

    # Deterministic example multi-task losses (scalars), e.g. loss1, loss2
    key = jax.random.PRNGKey(0)
    losses = jax.random.uniform(key, (num,), dtype=jnp.float32, minval=0.5, maxval=2.5)

    result = automatic_weighted_loss(losses, params)
    result = jax.block_until_ready(result)

    # Reference check in plain JAX (same math as the PyTorch forward)
    p2 = params ** 2
    ref = jnp.sum(0.5 / p2 * losses + jnp.log(1.0 + p2))
    assert jnp.allclose(result, ref, rtol=1e-5, atol=1e-5), (result, ref)

    print("KERNEL_OK")
</pallas_src>

<mosaic_0001>
module attributes {stable_mosaic.version = 11 : i64} {
  func.func @_awl_kernel(%arg0: memref<1x2xf32, #tpu.memory_space<vmem>>, %arg1: memref<1x2xf32, #tpu.memory_space<vmem>>, %arg2: memref<1x1xf32, #tpu.memory_space<smem>>) attributes {dimension_semantics = [], scalar_prefetch = 0 : i64, scratch_operands = 0 : i64, tpu.core_type = #tpu.core_type<tc>} {
    %c0 = arith.constant 0 : index
    %c0_0 = arith.constant 0 : index
    %0 = vector.load %arg0[%c0, %c0_0] : memref<1x2xf32, #tpu.memory_space<vmem>>, vector<1x2xf32>
    %c0_1 = arith.constant 0 : index
    %c0_2 = arith.constant 0 : index
    %1 = vector.load %arg1[%c0_1, %c0_2] : memref<1x2xf32, #tpu.memory_space<vmem>>, vector<1x2xf32>
    %2 = arith.mulf %1, %1 : vector<1x2xf32>
    %cst = arith.constant 5.000000e-01 : f32
    %3 = vector.broadcast %cst : f32 to vector<1x2xf32>
    %4 = arith.mulf %3, %0 : vector<1x2xf32>
    %5 = arith.divf %4, %2 : vector<1x2xf32>
    %6 = math.log1p %2 : vector<1x2xf32>
    %7 = arith.addf %5, %6 : vector<1x2xf32>
    %8 = vector.shape_cast %7 : vector<1x2xf32> to vector<1x1x2xf32>
    %cst_3 = arith.constant dense<0.000000e+00> : vector<1xf32>
    %9 = vector.multi_reduction <add>, %8, %cst_3 [1, 2] : vector<1x1x2xf32> to vector<1xf32>
    %10 = vector.shape_cast %9 : vector<1xf32> to vector<1x1x1xf32>
    %11 = vector.extract %10[0, 0, 0] : f32 from vector<1x1x1xf32>
    %c0_4 = arith.constant 0 : index
    %c0_5 = arith.constant 0 : index
    %12 = memref.load %arg2[%c0_4, %c0_5] : memref<1x1xf32, #tpu.memory_space<smem>>
    memref.store %11, %arg2[%c0_4, %c0_5] : memref<1x1xf32, #tpu.memory_space<smem>>
    return
  }
}

</mosaic_0001>

<llo_original>
// kernel: automatic_weighted_loss.2
$region0: #{automatic_weighted_loss.2}
  #allocation0 [shape = 'u32[]', space=smem, size = 0x4, offset = 0x4, fixed_abs, tag = 'smem constant byte address 0x4 - core index']
  #allocation1 [shape = 'u32[72,128]{1,0:T(1,128)}', space=vmem, size = 0x9000, scoped, tag = 'internal scratch']
  %s0 = inlined_call_operand.vmem [shape: f32[2], index: 0, kind: input, shape index: {}]
  %s1 = inlined_call_operand.hbm [shape: f32[2], index: 1, kind: input, shape index: {}]
  %s2 = inlined_call_operand.hbm [shape: f32[1,1], index: 2, kind: output, shape index: {}]
  %s3 = sld [smem:[#allocation0]]
  $region22: #{automatic_weighted_loss.2} parent=0
    _
  %s5 = ssub.s32 1, %s3
  %s6 = scalar_select 0, %s5, %s3
  $region1: #{automatic_weighted_loss.2} parent=0
    #allocation2 [shape = 'u8[512]{0}', space=vmem, size = 0x400, scoped, tag = 'operand span for operand 1']
    #allocation3 [shape = 's32[1]{0}', space=sflag, size = 0x4, scoped, tag = 'scoped memory for automatic_weighted_loss.2']
    #allocation4 [shape = 's32[1]{0}', space=sflag, size = 0x4, scoped, tag = 'scoped memory for automatic_weighted_loss.2']
    #allocation5 [shape = 'u8[512]{0}', space=smem, size = 0x200, scoped, tag = 'output window, operand 0, single buffered']
    #allocation6 [shape = 'u8[512]{0}', space=vmem, size = 0x400, dematerialized = true, scoped, tag = 'FusionAdapter Buffer %fusion.2 = f32[1,2]{1,0:T(1,128)} fusion(%param_1.2), kind=kLoop, calls=%fused_computation.2.clone, metadata={op_name="jit(automatic_weighted_loss)/reshape" stack_frame_id=7}']
    #allocation7 [shape = 'u8[512]{0}', space=vmem, size = 0x400, dematerialized = true, scoped, tag = 'FusionAdapter Buffer %fusion.1 = f32[1,2]{1,0:T(1,128)} fusion(%param_0.2), kind=kLoop, calls=%fused_computation.1.clone, metadata={op_name="jit(automatic_weighted_loss)/reshape" stack_frame_id=8}']
    %7 = vsyncpa [#allocation3], 0
    %8 = vsyncpa [#allocation4], 0
    // Predicated region
    $region2: #{automatic_weighted_loss.2} parent=1 // pred_check
      _
    $region3: #{automatic_weighted_loss.2} parent=1 // pred_check_branch
      %10 = sbr.rel (0) target = $region5
    $region4: #{automatic_weighted_loss.2} parent=1 // pred_region
      %12 = vsyncadd [#allocation3], 0
      %s14 = sshll.u32 %s1, 4
      %s15 = int_to_ptr.hbm [resolvable:$true] %s14
      %s16 = sshll.u32 [#allocation2], 4
      %s17 = int_to_ptr.vmem [resolvable:$true] %s16
      %19 = dma.hbm_to_vmem [thread:$0]  %s15, 16, %s17, [#allocation3]
    $region5: #{automatic_weighted_loss.2} parent=1 // pred_fallthru
      _
    // Predicated region
    $region6: #{automatic_weighted_loss.2} parent=1 // pred_check
      _
    $region7: #{automatic_weighted_loss.2} parent=1 // pred_check_branch
      %21 = sbr.rel (0) target = $region9
    $region8: #{automatic_weighted_loss.2} parent=1 // pred_region
      _
    $region9: #{automatic_weighted_loss.2} parent=1 // pred_fallthru
      _
    // Predicated region
    $region10: #{automatic_weighted_loss.2} parent=1 // pred_check
      _
    $region11: #{automatic_weighted_loss.2} parent=1 // pred_check_branch
      %23 = sbr.rel (0) target = $region13
    $region12: #{automatic_weighted_loss.2} parent=1 // pred_region
      %25 = dma.done [#allocation3], 16
    $region13: #{automatic_weighted_loss.2} parent=1 // pred_fallthru
      _
    %v26 = vld [vmem:[#allocation2] sm:$0x1]
    %s28 = ssub.s32 2, 1
    %29 = vst [vmem:[#allocation6] sm:%s28] %v26
    %v30 = vld [vmem:[%s0] sm:$0x1]
    %s32 = ssub.s32 2, 1
    %33 = vst [vmem:[#allocation7] sm:%s32] %v30
    %v34 = vld [vmem:[#allocation6] sm:$0x1]
    %v35 = vld [vmem:[#allocation7] sm:$0x1]
    %v36 = vmul.f32 %v35, %v35
    %v37 = vmul.f32 %v34, 0.5
    %v38 = vrcp.pop %v36
    %v39 = vmul.f32 %v36, %v38
    %v40 = vsub.f32 1.0, %v39
    %v41 = vmul.f32 %v38, %v40
    %v42 = vadd.f32 %v38, %v41
    %vm43 = vweird.f32 %v36
    %vm44 = vweird.f32 %v38
    %vm45 = vmor %vm43, %vm44
    %v46 = vsel %vm45, %v38, %v42
    %v47 = vand.u32 2147483647, %v36
    %vm48 = vcmp.eq.f32.partialorder %v47, 8.507059e+37
    %v49 = vand.u32 %v36, 2147483648
    %v50 = vor.u32 1.1754944e-38, %v49
    %v51 = vsel %vm48, %v50, %v46
    %v52 = vmul.f32 %v37, %v51
    %v53 = vadd.f32 %v36, 1.0
    %v54 = vlog2.pop %v53
    %v55 = vmul.f32 %v54, 0.6931472
    %v56 = vmul.f32 -0.5, %v36
    %v57 = vadd.f32 %v56, 1.0
    %v58 = vmul.f32 %v57, %v36
    %v59 = vand.u32 2147483647, %v36
    %vm60 = vcmp.lt.f32.partialorder %v59, 0.0004427343
    %v61 = vsel %vm60, %v58, %v55
    %v62 = vadd.f32 %v52, %v61
    %vm63 = vcmask 8192
    %v64 = vsel %vm63, %v62, 0.0
    %65 = vadd.xlane.f32.xlu0 %v64
    %v66 = vpop.xlane.xlu0 %65
    %v67 = vrot.slane %v66, 4
    %v68 = vadd.f32 %v66, %v67
    %v69 = vrot.slane %v68, 2
    %v70 = vadd.f32 %v68, %v69
    %v71 = vrot.slane %v70, 1
    %v72 = vadd.f32 %v70, %v71
    %s73 = vtos %v72
    %s74 = scalar_lea.smem [#allocation5], 0
    %75 = sst [smem:[%s74]] %s73
    // Predicated region
    $region14: #{automatic_weighted_loss.2} parent=1 // pred_check
      _
    $region15: #{automatic_weighted_loss.2} parent=1 // pred_check_branch
      %77 = sbr.rel (0) target = $region17
    $region16: #{automatic_weighted_loss.2} parent=1 // pred_region
      %79 = vsyncadd [#allocation4], 0
      %s81 = sshll.u32 %s2, 4
      %s82 = int_to_ptr.hbm [resolvable:$true] %s81
      %84 = dma.smem_to_hbm [#allocation5], 16, %s82, [#allocation4]
    $region17: #{automatic_weighted_loss.2} parent=1 // pred_fallthru
      _
    // Predicated region
    $region18: #{automatic_weighted_loss.2} parent=1 // pred_check
      _
    $region19: #{automatic_weighted_loss.2} parent=1 // pred_check_branch
      %86 = sbr.rel (0) target = $region21
    $region20: #{automatic_weighted_loss.2} parent=1 // pred_region
      %88 = dma.done [#allocation4], 16
    $region21: #{automatic_weighted_loss.2} parent=1 // pred_fallthru
      _
    %89 = sfence
    %90 = vsyncpa [#allocation3], 1
    %91 = vsyncpa [#allocation4], 1

</llo_original>
